<compile_context>
chip_gen: v7x
topology: tpu7x:2x2x1
jax: 0.10.0
libtpu: 0.0.40
codegen_flags: <defaults>
</compile_context>

<pallas_src>
import functools
import math

import jax
import jax.numpy as jnp
from jax.experimental import pallas as pl
from jax.experimental.pallas import tpu as pltpu


# ----------------------------- helpers ---------------------------------------

def _round_up(x, m):
    return (x + m - 1) // m * m


def _apply_act(name, x):
    """Activation on the f32 accumulator.  Raises on unknown names."""
    if name == "relu":
        return jnp.maximum(x, 0.0)
    if name == "tanh":
        return jnp.tanh(x)
    if name == "sigmoid":
        return jax.nn.sigmoid(x)
    if name in (None, "identity", "linear"):
        return x
    raise ValueError(f"Unknown activation: {name!r}")


# ----------------------------- fused Pallas kernel ----------------------------

def _fused_mlp_kernel(acts, n_layers, x_ref, *rest):
    """rest = (w0_ref, ..., w{n-1}_ref, o_ref).  All layers chained in VMEM."""
    w_refs = rest[:n_layers]
    o_ref = rest[n_layers]

    h = x_ref[...]                               # (tm, F0_pad), compute dtype (bf16)
    for w_ref, act in zip(w_refs, acts):
        # MXU matmul in bf16 with f32 accumulation.
        y = jnp.dot(h.astype(w_ref.dtype), w_ref[...],
                    preferred_element_type=jnp.float32)
        h = _apply_act(act, y)                   # elementwise in f32 (VPU/EUP)
    o_ref[...] = h.astype(o_ref.dtype)           # single lane-dense store


def fused_mlp(x, weights_t, activations, *, block_rows=256,
              compute_dtype=jnp.bfloat16, out_dtype=jnp.float32):
    """Fused forward pass: x -> act_0(x @ W0^T) -> ... -> act_{n-1}(. @ W{n-1}^T).

    x:          (B, F0) float array.
    weights_t:  list of pre-transposed weights, weights_t[l] has shape (Fin_l, Fout_l).
    activations: list of activation names, one per layer.
    """
    B, F0 = x.shape
    n = len(weights_t)
    assert len(activations) == n

    feat = [F0] + [w.shape[1] for w in weights_t]
    for l, w in enumerate(weights_t):
        assert w.shape[0] == feat[l], (l, w.shape, feat[l])

    # Lane-dense feature dims, sublane-aligned batch tile.
    feat_pad = [_round_up(f, 128) for f in feat]
    tm = _round_up(max(8, min(block_rows, _round_up(B, 8))), 8)
    B_pad = _round_up(B, tm)

    # Zero-pad inputs/weights (exact: padded rows/cols contribute nothing).
    x_p = jnp.zeros((B_pad, feat_pad[0]), compute_dtype)
    x_p = x_p.at[:B, :F0].set(x.astype(compute_dtype))
    ws_p = []
    for l, w in enumerate(weights_t):
        fin, fout = w.shape
        wp = jnp.zeros((feat_pad[l], feat_pad[l + 1]), compute_dtype)
        wp = wp.at[:fin, :fout].set(w.astype(compute_dtype))
        ws_p.append(wp)

    grid = (B_pad // tm,)
    in_specs = [pl.BlockSpec((tm, feat_pad[0]), lambda i: (i, 0))]
    for l in range(n):
        # Weights stay VMEM-resident across the whole batch grid.
        in_specs.append(
            pl.BlockSpec((feat_pad[l], feat_pad[l + 1]), lambda i: (0, 0)))
    out_spec = pl.BlockSpec((tm, feat_pad[-1]), lambda i: (i, 0))

    flops = int(sum(2 * B_pad * feat_pad[l] * feat_pad[l + 1] for l in range(n)))
    transcendentals = int(sum(B_pad * feat_pad[l + 1]
                              for l in range(n)
                              if activations[l] in ("tanh", "sigmoid")))
    bytes_accessed = int(
        x_p.size * x_p.dtype.itemsize
        + sum(w.size * w.dtype.itemsize for w in ws_p)
        + B_pad * feat_pad[-1] * jnp.dtype(out_dtype).itemsize)

    kernel = functools.partial(_fused_mlp_kernel, tuple(activations), n)
    out_p = pl.pallas_call(
        kernel,
        out_shape=jax.ShapeDtypeStruct((B_pad, feat_pad[-1]), out_dtype),
        grid=grid,
        in_specs=in_specs,
        out_specs=out_spec,
        compiler_params=pltpu.CompilerParams(
            dimension_semantics=("parallel",),     # batch tiles are independent
            vmem_limit_bytes=32 * 1024 * 1024),
        cost_estimate=pl.CostEstimate(
            flops=flops,
            transcendentals=transcendentals,
            bytes_accessed=bytes_accessed),
    )(x_p, *ws_p)

    return out_p[:B, :feat[-1]]


# ----------------------------- BaseFCN in JAX ---------------------------------

class BaseFCN:
    """JAX/Pallas port of the PyTorch BaseFCN (bias-free Linear layers + acts)."""

    def __init__(self, layer_sizes, activations, init_scale=1.0, seed=0,
                 compute_dtype=jnp.bfloat16, block_rows=256):
        # TODO(synk): config file reading (utils.read_config) has no Pallas/JAX
        # equivalent here; the `init` scaling factor is taken as a constructor arg.
        assert len(activations) == len(layer_sizes) - 1
        for a in activations:
            if a not in ("relu", "tanh", "sigmoid", "identity", "linear", None):
                raise ValueError(f"Unknown activation: {a!r}")
        self.activations = list(activations)
        self.compute_dtype = compute_dtype
        self.block_rows = block_rows
        self.weights_t = []  # stored as (in_f, out_f), i.e. W.T

        key = jax.random.PRNGKey(seed)
        for (in_f, out_f), act in zip(
                zip(layer_sizes[:-1], layer_sizes[1:]), activations):
            key, sub = jax.random.split(key)
            # Deterministic re-implementation of initialize_weights():
            if act == "relu":
                # kaiming_normal_, mode='fan_out', relu: std = sqrt(2 / fan_out)
                std = math.sqrt(2.0 / out_f)
                w = std * jax.random.normal(sub, (out_f, in_f), jnp.float32)
                w = w * init_scale
            elif act == "sigmoid":
                # xavier_uniform_ with gain('sigmoid') = 1.0
                bound = 1.0 * math.sqrt(6.0 / (in_f + out_f))
                w = jax.random.uniform(sub, (out_f, in_f), jnp.float32,
                                       -bound, bound) * init_scale
            elif act == "tanh":
                # xavier_uniform_ with gain('tanh') = 5/3
                bound = (5.0 / 3.0) * math.sqrt(6.0 / (in_f + out_f))
                w = jax.random.uniform(sub, (out_f, in_f), jnp.float32,
                                       -bound, bound) * init_scale
            else:
                # kaiming_normal_ defaults: fan_in, leaky_relu(a=0) -> gain sqrt(2)
                std = math.sqrt(2.0 / in_f)
                w = std * jax.random.normal(sub, (out_f, in_f), jnp.float32)
            self.weights_t.append(jnp.asarray(w.T))  # store (in_f, out_f), f32

    def __call__(self, x):
        return fused_mlp(x, self.weights_t, self.activations,
                         block_rows=self.block_rows,
                         compute_dtype=self.compute_dtype)

    def reference(self, x):
        """Plain-JAX reference with the same bf16-matmul / f32-accumulate math."""
        h = x
        for w_t, act in zip(self.weights_t, self.activations):
            y = jnp.dot(h.astype(self.compute_dtype),
                        w_t.astype(self.compute_dtype),
                        preferred_element_type=jnp.float32)
            h = _apply_act(act, y)
        return h.astype(jnp.float32)


# --------------------------------- main ---------------------------------------

if __name__ == "__main__":
    layer_sizes = [32, 64, 64, 16]
    activations = ["relu", "sigmoid", "tanh"]

    model = BaseFCN(layer_sizes, activations, init_scale=1.0, seed=0,
                    block_rows=256)

    key = jax.random.PRNGKey(0)

    # Case 1: batch large enough to exercise the batch grid (grid=(2,), tm=256).
    x_big = jax.random.normal(key, (512, layer_sizes[0]), jnp.float32)
    out_big = jax.block_until_ready(model(x_big))
    ref_big = jax.block_until_ready(model.reference(x_big))
    assert out_big.shape == (512, layer_sizes[-1])
    assert jnp.allclose(out_big, ref_big, atol=2e-3, rtol=2e-3)

    # Case 2: tiny batch (exercises batch padding to the 8-row sublane tile).
    key, sub = jax.random.split(key)
    x_small = jax.random.normal(sub, (4, layer_sizes[0]), jnp.float32)
    out_small = jax.block_until_ready(model(x_small))
    ref_small = jax.block_until_ready(model.reference(x_small))
    assert out_small.shape == (4, layer_sizes[-1])
    assert jnp.allclose(out_small, ref_small, atol=2e-3, rtol=2e-3)

    print("KERNEL_OK")
</pallas_src>

<mosaic_0001>
module attributes {stable_mosaic.version = 11 : i64} {
  func.func @_fused_mlp_kernel(%arg0: i32, %arg1: memref<256x128xbf16, #tpu.memory_space<vmem>>, %arg2: memref<128x128xbf16, #tpu.memory_space<vmem>>, %arg3: memref<128x128xbf16, #tpu.memory_space<vmem>>, %arg4: memref<128x128xbf16, #tpu.memory_space<vmem>>, %arg5: memref<256x128xf32, #tpu.memory_space<vmem>>) attributes {dimension_semantics = [#tpu.dimension_semantics<parallel>], iteration_bounds = array<i64: 2>, scalar_prefetch = 0 : i64, scratch_operands = 0 : i64, tpu.core_type = #tpu.core_type<tc>, window_params = [{transform_indices = @transform_0, window_bounds = array<i64: 256, 128>}, {pipeline_mode = #tpu.pipeline_mode<synchronous>, transform_indices = @transform_1, window_bounds = array<i64: 128, 128>}, {pipeline_mode = #tpu.pipeline_mode<synchronous>, transform_indices = @transform_2, window_bounds = array<i64: 128, 128>}, {pipeline_mode = #tpu.pipeline_mode<synchronous>, transform_indices = @transform_3, window_bounds = array<i64: 128, 128>}, {transform_indices = @transform_4, window_bounds = array<i64: 256, 128>}]} {
    %c0 = arith.constant 0 : index
    %c0_0 = arith.constant 0 : index
    %0 = vector.load %arg1[%c0, %c0_0] : memref<256x128xbf16, #tpu.memory_space<vmem>>, vector<256x128xbf16>
    %c0_1 = arith.constant 0 : index
    %c0_2 = arith.constant 0 : index
    %1 = vector.load %arg2[%c0_1, %c0_2] : memref<128x128xbf16, #tpu.memory_space<vmem>>, vector<128x128xbf16>
    %cst = arith.constant dense<0.000000e+00> : vector<256x128xf32>
    %2 = tpu.matmul %0, %1, %cst {dimension_numbers = #tpu.dot_dimension_numbers<[1], [0], [0], [1], [0, 0, 1, 1], [], []>} : vector<256x128xbf16>, vector<128x128xbf16>, vector<256x128xf32> -> vector<256x128xf32>
    %cst_3 = arith.constant 0.000000e+00 : f32
    %3 = vector.broadcast %cst_3 : f32 to vector<256x128xf32>
    %4 = arith.maximumf %2, %3 : vector<256x128xf32>
    %5 = arith.truncf %4 : vector<256x128xf32> to vector<256x128xbf16>
    %c0_4 = arith.constant 0 : index
    %c0_5 = arith.constant 0 : index
    %6 = vector.load %arg3[%c0_4, %c0_5] : memref<128x128xbf16, #tpu.memory_space<vmem>>, vector<128x128xbf16>
    %cst_6 = arith.constant dense<0.000000e+00> : vector<256x128xf32>
    %7 = tpu.matmul %5, %6, %cst_6 {dimension_numbers = #tpu.dot_dimension_numbers<[1], [0], [0], [1], [0, 0, 1, 1], [], []>} : vector<256x128xbf16>, vector<128x128xbf16>, vector<256x128xf32> -> vector<256x128xf32>
    %8 = arith.negf %7 : vector<256x128xf32>
    %9 = math.exp %8 : vector<256x128xf32>
    %cst_7 = arith.constant 1.000000e+00 : f32
    %10 = vector.broadcast %cst_7 : f32 to vector<256x128xf32>
    %11 = arith.addf %10, %9 : vector<256x128xf32>
    %12 = arith.divf %10, %11 : vector<256x128xf32>
    %13 = arith.truncf %12 : vector<256x128xf32> to vector<256x128xbf16>
    %c0_8 = arith.constant 0 : index
    %c0_9 = arith.constant 0 : index
    %14 = vector.load %arg4[%c0_8, %c0_9] : memref<128x128xbf16, #tpu.memory_space<vmem>>, vector<128x128xbf16>
    %cst_10 = arith.constant dense<0.000000e+00> : vector<256x128xf32>
    %15 = tpu.matmul %13, %14, %cst_10 {dimension_numbers = #tpu.dot_dimension_numbers<[1], [0], [0], [1], [0, 0, 1, 1], [], []>} : vector<256x128xbf16>, vector<128x128xbf16>, vector<256x128xf32> -> vector<256x128xf32>
    %16 = math.tanh %15 : vector<256x128xf32>
    %c0_11 = arith.constant 0 : index
    %c0_12 = arith.constant 0 : index
    %17 = vector.load %arg5[%c0_11, %c0_12] : memref<256x128xf32, #tpu.memory_space<vmem>>, vector<256x128xf32>
    tpu.vector_store %arg5[%c0_11, %c0_12], %16 {strides = array<i32>} : memref<256x128xf32, #tpu.memory_space<vmem>>, vector<256x128xf32>,
    return
  }
  func.func @transform_0(%arg0: i32) -> (i32, i32) {
    %c0_i32 = arith.constant 0 : i32
    %c0_i32_0 = arith.constant 0 : i32
    return %arg0, %c0_i32 : i32, i32
  }
  func.func @transform_1(%arg0: i32) -> (i32, i32) {
    %c0_i32 = arith.constant 0 : i32
    %c0_i32_0 = arith.constant 0 : i32
    %c0_i32_1 = arith.constant 0 : i32
    return %c0_i32, %c0_i32_0 : i32, i32
  }
  func.func @transform_2(%arg0: i32) -> (i32, i32) {
    %c0_i32 = arith.constant 0 : i32
    %c0_i32_0 = arith.constant 0 : i32
    %c0_i32_1 = arith.constant 0 : i32
    return %c0_i32, %c0_i32_0 : i32, i32
  }
  func.func @transform_3(%arg0: i32) -> (i32, i32) {
    %c0_i32 = arith.constant 0 : i32
    %c0_i32_0 = arith.constant 0 : i32
    %c0_i32_1 = arith.constant 0 : i32
    return %c0_i32, %c0_i32_0 : i32, i32
  }
  func.func @transform_4(%arg0: i32) -> (i32, i32) {
    %c0_i32 = arith.constant 0 : i32
    %c0_i32_0 = arith.constant 0 : i32
    return %arg0, %c0_i32 : i32, i32
  }
}

</mosaic_0001>

<llo_original>
// kernel: tpu_custom_call.1
$region0: #{tpu_custom_call.1}
  #allocation0 [shape = 'u32[]', space=smem, size = 0x4, offset = 0x4, fixed_abs, tag = 'smem constant byte address 0x4 - core index']
  #allocation1 [shape = 'u32[144,128]{1,0:T(1,128)}', space=vmem, size = 0x12000, scoped, tag = 'internal scratch']
  %s0 = inlined_call_operand.hbm [shape: bf16[512,128], index: 0, kind: input, shape index: {}]
  %s1 = inlined_call_operand.hbm [shape: bf16[128,128], index: 1, kind: input, shape index: {}]
  %s2 = inlined_call_operand.hbm [shape: bf16[128,128], index: 2, kind: input, shape index: {}]
  %s3 = inlined_call_operand.hbm [shape: bf16[128,128], index: 3, kind: input, shape index: {}]
  %s4 = inlined_call_operand.hbm [shape: f32[512,128], index: 4, kind: output, shape index: {}]
  %s5 = sld [smem:[#allocation0]]
  $region65: #{tpu_custom_call.1} parent=0
    _
  %s7 = ssub.s32 1, %s5
  %s8 = scalar_select 0, %s7, %s5
  $region1: #{tpu_custom_call.1} parent=0
    #allocation2 [shape = 'u8[131072]{0}', space=vmem, size = 0x20000, scoped, tag = 'input window, operand 0']
    #allocation3 [shape = 's32[2]{0}', space=sflag, size = 0x8, scoped, tag = 'scoped memory for tpu_custom_call.1']
    #allocation4 [shape = 's32[2]{0}', space=sflag, size = 0x8, scoped, tag = 'scoped memory for tpu_custom_call.1']
    #allocation5 [shape = 'u8[32768]{0}', space=vmem, size = 0x8000, scoped, tag = 'input window, operand 1, single buffered']
    #allocation6 [shape = 's32[1]{0}', space=sflag, size = 0x4, scoped, tag = 'scoped memory for tpu_custom_call.1']
    #allocation7 [shape = 'u8[32768]{0}', space=vmem, size = 0x8000, scoped, tag = 'input window, operand 2, single buffered']
    #allocation8 [shape = 'u8[32768]{0}', space=vmem, size = 0x8000, scoped, tag = 'input window, operand 3, single buffered']
    #allocation9 [shape = 's32[1]{0}', space=sflag, size = 0x4, scoped, tag = 'scoped memory for tpu_custom_call.1']
    #allocation10 [shape = 'u8[262144]{0}', space=vmem, size = 0x40000, scoped, tag = 'output window, operand 0']
    %9 = vsyncpa [#allocation3], 0
    %s10 = scalar_lea.sflag [#allocation3], 1
    %11 = vsyncpa %s10, 0
    %12 = vsyncpa [#allocation6], 0
    %13 = vsyncpa [#allocation9], 0
    %14 = vsyncpa [#allocation4], 0
    %s15 = scalar_lea.sflag [#allocation4], 1
    %16 = vsyncpa %s15, 0
    loop: start=0, step=1, limit=4
    $region2: #{tpu_custom_call.1} parent=1 // loop_pre_header
      _
    $region3: #{tpu_custom_call.1} parent=1 // loop_header
      %s18 = sphi 0, %s22
      %p19 = scmp.ge.s32.totalorder %s18, 4
      %s28 = sphi 0, %s30
      %s31 = sphi 0, %s28
      %s32 = sphi 0, %s31
      %s48 = sphi 0, %s32
      %s52 = sphi 0, %s52
      %s54 = sphi 0, %s52
      %s55 = sphi 0, %s54
      %s69 = sphi 0, %s55
      %s73 = sphi 0, %s73
      %s75 = sphi 0, %s73
      %s76 = sphi 0, %s75
      %s90 = sphi 0, %s76
      %s94 = sphi 0, %s94
      %s96 = sphi 0, %s94
      %s97 = sphi 0, %s96
      %s111 = sphi 0, %s97
      %s117 = sphi 0, %s119
      %s120 = sphi 0, %s117
      %s121 = sphi 0, %s120
      %s137 = sphi 0, %s121
    $region4: #{tpu_custom_call.1} parent=1 // loop_header_branch
      %21 = sbr.rel (%p19) target = $region8
    $region5: #{tpu_custom_call.1} parent=1 // loop_body
      %s23 = ssub.s32 %s18, 1
      %s24 = ssub.s32 %s18, 2
      %s25 = sadd.s32 %s18, 1
      %s26 = ssub.s32 %s18, %s25
      %p27 = scmp.eq.s32.totalorder %s26, 0
      %s29 = sadd.s32 %s28, 1
      %s30 = scalar_select %p27, %s28, %s29
      %p33 = pneg %p27
      %p34 = scmp.eq.s32.totalorder %s18, 1
      %p35 = por %p33, %p34
      %p36 = scmp.ne.s32.totalorder %s28, %s31
      %p37 = scmp.eq.s32.totalorder %s18, 0
      %p38 = por %p36, %p37
      %p39 = scmp.ne.s32.totalorder %s28, %s31
      %p40 = scmp.eq.s32.totalorder %s23, 1
      %p41 = por %p39, %p40
      %p42 = scmp.ne.s32.totalorder %s31, %s32
      %p43 = scmp.eq.s32.totalorder %s23, 0
      %p44 = por %p42, %p43
      %p45 = scmp.ne.s32.totalorder %s31, %s32
      %p46 = scmp.eq.s32.totalorder %s24, 1
      %p47 = por %p45, %p46
      %p49 = scmp.ne.s32.totalorder %s32, %s48
      %p50 = scmp.eq.s32.totalorder %s24, 0
      %p51 = por %p49, %p50
      %s53 = sadd.s32 %s52, 1
      %p56 = scmp.eq.s32.totalorder %s18, 1
      %p57 = scmp.ne.s32.totalorder %s52, %s54
      %p58 = scmp.eq.s32.totalorder %s18, 0
      %p59 = por %p57, %p58
      %p60 = scmp.ne.s32.totalorder %s52, %s54
      %p61 = scmp.eq.s32.totalorder %s23, 1
      %p62 = por %p60, %p61
      %p63 = scmp.ne.s32.totalorder %s54, %s55
      %p64 = scmp.eq.s32.totalorder %s23, 0
      %p65 = por %p63, %p64
      %p66 = scmp.ne.s32.totalorder %s54, %s55
      %p67 = scmp.eq.s32.totalorder %s24, 1
      %p68 = por %p66, %p67
      %p70 = scmp.ne.s32.totalorder %s55, %s69
      %p71 = scmp.eq.s32.totalorder %s24, 0
      %p72 = por %p70, %p71
      %s74 = sadd.s32 %s73, 1
      %p77 = scmp.eq.s32.totalorder %s18, 1
      %p78 = scmp.ne.s32.totalorder %s73, %s75
      %p79 = scmp.eq.s32.totalorder %s18, 0
      %p80 = por %p78, %p79
      %p81 = scmp.ne.s32.totalorder %s73, %s75
      %p82 = scmp.eq.s32.totalorder %s23, 1
      %p83 = por %p81, %p82
      %p84 = scmp.ne.s32.totalorder %s75, %s76
      %p85 = scmp.eq.s32.totalorder %s23, 0
      %p86 = por %p84, %p85
      %p87 = scmp.ne.s32.totalorder %s75, %s76
      %p88 = scmp.eq.s32.totalorder %s24, 1
      %p89 = por %p87, %p88
      %p91 = scmp.ne.s32.totalorder %s76, %s90
      %p92 = scmp.eq.s32.totalorder %s24, 0
      %p93 = por %p91, %p92
      %s95 = sadd.s32 %s94, 1
      %p98 = scmp.eq.s32.totalorder %s18, 1
      %p99 = scmp.ne.s32.totalorder %s94, %s96
      %p100 = scmp.eq.s32.totalorder %s18, 0
      %p101 = por %p99, %p100
      %p102 = scmp.ne.s32.totalorder %s94, %s96
      %p103 = scmp.eq.s32.totalorder %s23, 1
      %p104 = por %p102, %p103
      %p105 = scmp.ne.s32.totalorder %s96, %s97
      %p106 = scmp.eq.s32.totalorder %s23, 0
      %p107 = por %p105, %p106
      %p108 = scmp.ne.s32.totalorder %s96, %s97
      %p109 = scmp.eq.s32.totalorder %s24, 1
      %p110 = por %p108, %p109
      %p112 = scmp.ne.s32.totalorder %s97, %s111
      %p113 = scmp.eq.s32.totalorder %s24, 0
      %p114 = por %p112, %p113
      %s115 = ssub.s32 %s18, %s25
      %p116 = scmp.eq.s32.totalorder %s115, 0
      %s118 = sadd.s32 %s117, 1
      %s119 = scalar_select %p116, %s117, %s118
      %p122 = pneg %p116
      %p123 = scmp.eq.s32.totalorder %s18, 1
      %p124 = por %p122, %p123
      %p125 = scmp.ne.s32.totalorder %s117, %s120
      %p126 = scmp.eq.s32.totalorder %s18, 0
      %p127 = por %p125, %p126
      %p128 = scmp.ne.s32.totalorder %s117, %s120
      %p129 = scmp.eq.s32.totalorder %s23, 1
      %p130 = por %p128, %p129
      %p131 = scmp.ne.s32.totalorder %s120, %s121
      %p132 = scmp.eq.s32.totalorder %s23, 0
      %p133 = por %p131, %p132
      %p134 = scmp.ne.s32.totalorder %s120, %s121
      %p135 = scmp.eq.s32.totalorder %s24, 1
      %p136 = por %p134, %p135
      %p138 = scmp.ne.s32.totalorder %s121, %s137
      %p139 = scmp.eq.s32.totalorder %s24, 0
      %p140 = por %p138, %p139
      %p141 = scmp.le.s32.totalorder 1, %s18
      %p142 = scmp.lt.s32.totalorder %s18, 3
      %p143 = pnand %p141, %p142
      %p144 = pneg %p143
      // Predicated region
      $region9: #{tpu_custom_call.1} parent=5 // pred_check
        _
      $region10: #{tpu_custom_call.1} parent=5 // pred_check_branch
        %146 = sbr.rel (%p143) target = $region12
      $region11: #{tpu_custom_call.1} parent=5 // pred_region
        %s147 = ssub.s32 %s18, 1
        // Predicated region
        $region13: #{tpu_custom_call.1} parent=11 // pred_check
          %p148 = pneg %p65
        $region14: #{tpu_custom_call.1} parent=11 // pred_check_branch
          %150 = sbr.rel (%p148) target = $region16
        $region15: #{tpu_custom_call.1} parent=11 // pred_region
          %s152 = ssub.s32 1024, 1024
          %153 = vsyncadd [#allocation6], %s152
          %s154 = sshll.u32 [#allocation5], 4
          %s155 = int_to_ptr.vmem [resolvable:$true] %s154
          %160 = dma.hbm_to_vmem [thread:$0]  %s1, 1024, %s155, [#allocation6], 64, 64, 4
        $region16: #{tpu_custom_call.1} parent=11 // pred_fallthru
          _
        // Predicated region
        $region17: #{tpu_custom_call.1} parent=11 // pred_check
          %p161 = pneg %p86
        $region18: #{tpu_custom_call.1} parent=11 // pred_check_branch
          %163 = sbr.rel (%p161) target = $region20
        $region19: #{tpu_custom_call.1} parent=11 // pred_region
          %s165 = ssub.s32 1024, 1024
          %166 = vsyncadd [#allocation6], %s165
          %s167 = sshll.u32 [#allocation7], 4
          %s168 = int_to_ptr.vmem [resolvable:$true] %s167
          %173 = dma.hbm_to_vmem [thread:$0]  %s2, 1024, %s168, [#allocation6], 64, 64, 4
        $region20: #{tpu_custom_call.1} parent=11 // pred_fallthru
          _
        // Predicated region
        $region21: #{tpu_custom_call.1} parent=11 // pred_check
          %p174 = pneg %p107
        $region22: #{tpu_custom_call.1} parent=11 // pred_check_branch
          %176 = sbr.rel (%p174) target = $region24
        $region23: #{tpu_custom_call.1} parent=11 // pred_region
          %s178 = ssub.s32 1024, 1024
          %179 = vsyncadd [#allocation9], %s178
          %s180 = sshll.u32 [#allocation8], 4
          %s181 = int_to_ptr.vmem [resolvable:$true] %s180
          %186 = dma.hbm_to_vmem [thread:$0]  %s3, 1024, %s181, [#allocation9], 64, 64, 4
        $region24: #{tpu_custom_call.1} parent=11 // pred_fallthru
          _
      $region12: #{tpu_custom_call.1} parent=5 // pred_fallthru
        _
      %p187 = scmp.lt.s32.totalorder %s18, 2
      // Predicated region
      $region25: #{tpu_custom_call.1} parent=5 // pred_check
        %p188 = pneg %p187
      $region26: #{tpu_custom_call.1} parent=5 // pred_check_branch
        %190 = sbr.rel (%p188) target = $region28
      $region27: #{tpu_custom_call.1} parent=5 // pred_region
        // Predicated region
        $region29: #{tpu_custom_call.1} parent=27 // pred_check
          %p191 = pneg %p38
        $region30: #{tpu_custom_call.1} parent=27 // pred_check_branch
          %193 = sbr.rel (%p191) target = $region32
        $region31: #{tpu_custom_call.1} parent=27 // pred_region
          %s194 = sand.u32 %s28, 1
          %s195 = scalar_lea.sflag [#allocation3], %s194
          %s196 = sand.u32 %s28, 1
          %s197 = smul.addr %s196, 128
          %s198 = scalar_lea.vmem [#allocation2], %s197
          %s199 = smul.u32 32, %s18
          %s201 = ssub.s32 2048, 2048
          %202 = vsyncadd %s195, %s201
          %s203 = smul.addr %s199, 64
          %s204 = scalar_lea.hbm %s0, %s203
          %s205 = sshll.u32 %s198, 4
          %s206 = int_to_ptr.vmem [resolvable:$true] %s205
          %211 = dma.hbm_to_vmem [thread:$0]  %s204, 2048, %s206, %s195, 64, 64, 4
        $region32: #{tpu_custom_call.1} parent=27 // pred_fallthru
          _
      $region28: #{tpu_custom_call.1} parent=5 // pred_fallthru
        _
      %p212 = scmp.le.s32.totalorder 1, %s18
      %p213 = scmp.lt.s32.totalorder %s18, 3
      %p214 = pnand %p212, %p213
      %p215 = pneg %p214
      // Predicated region
      $region33: #{tpu_custom_call.1} parent=5 // pred_check
        _
      $region34: #{tpu_custom_call.1} parent=5 // pred_check_branch
        %217 = sbr.rel (%p214) target = $region36
      $region35: #{tpu_custom_call.1} parent=5 // pred_region
        %s218 = ssub.s32 %s18, 1
        %s219 = sand.u32 %s31, 1
        %s220 = scalar_lea.sflag [#allocation3], %s219
        %s221 = sand.u32 %s31, 1
        %s222 = smul.addr %s221, 128
        %s223 = scalar_lea.vmem [#allocation2], %s222
        // Predicated region
        $region37: #{tpu_custom_call.1} parent=35 // pred_check
          %p224 = pneg %p44
        $region38: #{tpu_custom_call.1} parent=35 // pred_check_branch
          %226 = sbr.rel (%p224) target = $region40
        $region39: #{tpu_custom_call.1} parent=35 // pred_region
          %227 = dma.done %s220, 2048
        $region40: #{tpu_custom_call.1} parent=35 // pred_fallthru
          _
        // Predicated region
        $region41: #{tpu_custom_call.1} parent=35 // pred_check
          %p228 = pneg %p65
        $region42: #{tpu_custom_call.1} parent=35 // pred_check_branch
          %230 = sbr.rel (%p228) target = $region44
        $region43: #{tpu_custom_call.1} parent=35 // pred_region
          %231 = dma.done [#allocation6], 1024
        $region44: #{tpu_custom_call.1} parent=35 // pred_fallthru
          _
        // Predicated region
        $region45: #{tpu_custom_call.1} parent=35 // pred_check
          %p232 = pneg %p86
        $region46: #{tpu_custom_call.1} parent=35 // pred_check_branch
          %234 = sbr.rel (%p232) target = $region48
        $region47: #{tpu_custom_call.1} parent=35 // pred_region
          %235 = dma.done [#allocation6], 1024
        $region48: #{tpu_custom_call.1} parent=35 // pred_fallthru
          _
        // Predicated region
        $region49: #{tpu_custom_call.1} parent=35 // pred_check
          %p236 = pneg %p107
        $region50: #{tpu_custom_call.1} parent=35 // pred_check_branch
          %238 = sbr.rel (%p236) target = $region52
        $region51: #{tpu_custom_call.1} parent=35 // pred_region
          %239 = dma.done [#allocation9], 1024
        $region52: #{tpu_custom_call.1} parent=35 // pred_fallthru
          _
        %s240 = sand.u32 %s31, 1
        %s241 = scalar_lea.sflag [#allocation3], %s240
        %s242 = sand.u32 %s31, 1
        %s243 = smul.addr %s242, 128
        %s244 = scalar_lea.vmem [#allocation2], %s243
        %p245 = pneg %p44
        %p246 = pneg %p41
        %p247 = pneg %p65
        %p248 = pneg %p62
        %p249 = pneg %p86
        %p250 = pneg %p83
        %p251 = pneg %p107
        %p252 = pneg %p104
        %p253 = pneg %p133
        %p254 = pneg %p130
        %s255 = sand.u32 %s120, 1
        %s256 = scalar_lea.sflag [#allocation4], %s255
        %s257 = sand.u32 %s120, 1
        %s258 = smul.addr %s257, 256
        %s259 = scalar_lea.vmem [#allocation10], %s258
        %s260 = smul.u32 32, %s23
        %s261 = smul.u32 32, %s23
        %v263 = vld [vmem:[%s223] sm:$0xf]
        %v264 = vld [vmem:[%s223 + $0x4] sm:$0xf]
        %v265 = vld [vmem:[%s223 + $0x8] sm:$0xf]
        %v266 = vld [vmem:[%s223 + $0xc] sm:$0xf]
        %v267 = vld [vmem:[%s223 + $0x10] sm:$0xf]
        %v268 = vld [vmem:[%s223 + $0x14] sm:$0xf]
        %v269 = vld [vmem:[%s223 + $0x18] sm:$0xf]
        %v270 = vld [vmem:[%s223 + $0x1c] sm:$0xf]
        %v271 = vld [vmem:[%s223 + $0x20] sm:$0xf]
        %v272 = vld [vmem:[%s223 + $0x24] sm:$0xf]
        %v273 = vld [vmem:[%s223 + $0x28] sm:$0xf]
        %v274 = vld [vmem:[%s223 + $0x2c] sm:$0xf]
        %v275 = vld [vmem:[%s223 + $0x30] sm:$0xf]
        %v276 = vld [vmem:[%s223 + $0x34] sm:$0xf]
        %v277 = vld [vmem:[%s223 + $0x38] sm:$0xf]
        %v278 = vld [vmem:[%s223 + $0x3c] sm:$0xf]
        %v279 = vld [vmem:[%s223 + $0x40] sm:$0xf]
        %v280 = vld [vmem:[%s223 + $0x44] sm:$0xf]
        %v281 = vld [vmem:[%s223 + $0x48] sm:$0xf]
        %v282 = vld [vmem:[%s223 + $0x4c] sm:$0xf]
        %v283 = vld [vmem:[%s223 + $0x50] sm:$0xf]
        %v284 = vld [vmem:[%s223 + $0x54] sm:$0xf]
        %v285 = vld [vmem:[%s223 + $0x58] sm:$0xf]
        %v286 = vld [vmem:[%s223 + $0x5c] sm:$0xf]
        %v287 = vld [vmem:[%s223 + $0x60] sm:$0xf]
        %v288 = vld [vmem:[%s223 + $0x64] sm:$0xf]
        %v289 = vld [vmem:[%s223 + $0x68] sm:$0xf]
        %v290 = vld [vmem:[%s223 + $0x6c] sm:$0xf]
        %v291 = vld [vmem:[%s223 + $0x70] sm:$0xf]
        %v292 = vld [vmem:[%s223 + $0x74] sm:$0xf]
        %v293 = vld [vmem:[%s223 + $0x78] sm:$0xf]
        %v294 = vld [vmem:[%s223 + $0x7c] sm:$0xf]
        %v295 = vld [vmem:[#allocation5] sm:$0xf]
        %v296 = vld [vmem:[#allocation5 + $0x4] sm:$0xf]
        %v297 = vld [vmem:[#allocation5 + $0x8] sm:$0xf]
        %v298 = vld [vmem:[#allocation5 + $0xc] sm:$0xf]
        %v299 = vld [vmem:[#allocation5 + $0x10] sm:$0xf]
        %v300 = vld [vmem:[#allocation5 + $0x14] sm:$0xf]
        %v301 = vld [vmem:[#allocation5 + $0x18] sm:$0xf]
        %v302 = vld [vmem:[#allocation5 + $0x1c] sm:$0xf]
        %v303 = vld [vmem:[#allocation5 + $0x20] sm:$0xf]
        %v304 = vld [vmem:[#allocation5 + $0x24] sm:$0xf]
        %v305 = vld [vmem:[#allocation5 + $0x28] sm:$0xf]
        %v306 = vld [vmem:[#allocation5 + $0x2c] sm:$0xf]
        %v307 = vld [vmem:[#allocation5 + $0x30] sm:$0xf]
        %v308 = vld [vmem:[#allocation5 + $0x34] sm:$0xf]
        %v309 = vld [vmem:[#allocation5 + $0x38] sm:$0xf]
        %v310 = vld [vmem:[#allocation5 + $0x3c] sm:$0xf]
        %v343 = vunpack.c.l.b16 %v263
        %v344 = vunpack.c.l.b16 %v264
        %v345 = vunpack.c.l.b16 %v265
        %v346 = vunpack.c.l.b16 %v266
        %v347 = vunpack.c.l.b16 %v267
        %v348 = vunpack.c.l.b16 %v268
        %v349 = vunpack.c.l.b16 %v269
        %v350 = vunpack.c.l.b16 %v270
        %v351 = vunpack.c.l.b16 %v271
        %v352 = vunpack.c.l.b16 %v272
        %v353 = vunpack.c.l.b16 %v273
        %v354 = vunpack.c.l.b16 %v274
        %v355 = vunpack.c.l.b16 %v275
        %v356 = vunpack.c.l.b16 %v276
        %v357 = vunpack.c.l.b16 %v277
        %v358 = vunpack.c.l.b16 %v278
        %v359 = vunpack.c.l.b16 %v279
        %v360 = vunpack.c.l.b16 %v280
        %v361 = vunpack.c.l.b16 %v281
        %v362 = vunpack.c.l.b16 %v282
        %v363 = vunpack.c.l.b16 %v283
        %v364 = vunpack.c.l.b16 %v284
        %v365 = vunpack.c.l.b16 %v285
        %v366 = vunpack.c.l.b16 %v286
        %v367 = vunpack.c.l.b16 %v287
        %v368 = vunpack.c.l.b16 %v288
        %v369 = vunpack.c.l.b16 %v289
        %v370 = vunpack.c.l.b16 %v290
        %v371 = vunpack.c.l.b16 %v291
        %v372 = vunpack.c.l.b16 %v292
        %v373 = vunpack.c.l.b16 %v293
        %v374 = vunpack.c.l.b16 %v294
        %v375 = vpack.c.b16 %v344, %v343
        %v376 = vpack.c.b16 %v346, %v345
        %v377 = vpack.c.b16 %v348, %v347
        %v378 = vpack.c.b16 %v350, %v349
        %v379 = vpack.c.b16 %v352, %v351
        %v380 = vpack.c.b16 %v354, %v353
        %v381 = vpack.c.b16 %v356, %v355
        %v382 = vpack.c.b16 %v358, %v357
        %v383 = vpack.c.b16 %v360, %v359
        %v384 = vpack.c.b16 %v362, %v361
        %v385 = vpack.c.b16 %v364, %v363
        %v386 = vpack.c.b16 %v366, %v365
        %v387 = vpack.c.b16 %v368, %v367
        %v388 = vpack.c.b16 %v370, %v369
        %v389 = vpack.c.b16 %v372, %v371
        %v390 = vpack.c.b16 %v374, %v373
        %v423 = vunpack.c.l.b16 %v295
        %v424 = vunpack.c.l.b16 %v296
        %v425 = vunpack.c.l.b16 %v297
        %v426 = vunpack.c.l.b16 %v298
        %v427 = vunpack.c.l.b16 %v299
        %v428 = vunpack.c.l.b16 %v300
        %v429 = vunpack.c.l.b16 %v301
        %v430 = vunpack.c.l.b16 %v302
        %v431 = vunpack.c.l.b16 %v303
        %v432 = vunpack.c.l.b16 %v304
        %v433 = vunpack.c.l.b16 %v305
        %v434 = vunpack.c.l.b16 %v306
        %v435 = vunpack.c.l.b16 %v307
        %v436 = vunpack.c.l.b16 %v308
        %v437 = vunpack.c.l.b16 %v309
        %v438 = vunpack.c.l.b16 %v310
        %v439 = vpack.c.b16 %v424, %v423
        %v440 = vpack.c.b16 %v426, %v425
        %v441 = vpack.c.b16 %v428, %v427
        %v442 = vpack.c.b16 %v430, %v429
        %v443 = vpack.c.b16 %v432, %v431
        %v444 = vpack.c.b16 %v434, %v433
        %v445 = vpack.c.b16 %v436, %v435
        %v446 = vpack.c.b16 %v438, %v437
        %455 = vmatprep.subr.bf16.mxu0 0
        %456 = vmatpush1.bf16.msra.mxu0 %v439
        %457 = vmatprep.subr.bf16.mxu0 0
        %458 = vmatpush1.bf16.msra.mxu0 %v440
        %459 = vmatprep.subr.bf16.mxu0 0
        %460 = vmatpush1.bf16.msra.mxu0 %v441
        %461 = vmatprep.subr.bf16.mxu0 0
        %462 = vmatpush1.bf16.msra.mxu0 %v442
        %463 = vmatprep.subr.bf16.mxu0 0
        %464 = vmatpush1.bf16.msra.mxu0 %v443
        %465 = vmatprep.subr.bf16.mxu0 0
        %466 = vmatpush1.bf16.msra.mxu0 %v444
        %467 = vmatprep.subr.bf16.mxu0 0
        %468 = vmatpush1.bf16.msra.mxu0 %v445
        %469 = vmatprep.subr.bf16.mxu0 0
        %470 = vmatpush1.bf16.msra.mxu0 %v446
        %471 = vmatprep.subr.bf16.mxu0 0
        %472 = vmatpush1.bf16.msra.mxu0 0
        %473 = vmatprep.subr.bf16.mxu0 0
        %474 = vmatpush1.bf16.msra.mxu0 0
        %475 = vmatprep.subr.bf16.mxu0 0
        %476 = vmatpush1.bf16.msra.mxu0 0
        %477 = vmatprep.subr.bf16.mxu0 0
        %478 = vmatpush1.bf16.msra.mxu0 0
        %479 = vmatprep.subr.bf16.mxu0 0
        %480 = vmatpush1.bf16.msra.mxu0 0
        %481 = vmatprep.subr.bf16.mxu0 0
        %482 = vmatpush1.bf16.msra.mxu0 0
        %483 = vmatprep.subr.bf16.mxu0 0
        %484 = vmatpush1.bf16.msra.mxu0 0
        %485 = vmatprep.subr.bf16.mxu0 0
        %486 = vmatpush1.bf16.msra.mxu0 0
        %487 = vmatprep.mubr.bf16.mxu0 0
        %488 = vmatmul.mubr.bf16.gmra.mrb[0].mxu0 %v375
        %v489 = vpop.f32.mrb[0].mxu0
        %v490 = vadd.f32 0.0, %v489
        %v491 = vpop.f32.mrb[0].mxu0
        %v492 = vpop.f32.mrb[0].mxu0
        %v493 = vadd.f32 0.0, %v492
        %v494 = vpop.f32.mrb[0].mxu0
        %495 = vmatprep.mubr.bf16.mxu0 0
        %496 = vmatmul.mubr.bf16.gmra.mrb[0].mxu0 %v376
        %v497 = vpop.f32.mrb[0].mxu0
        %v498 = vadd.f32 0.0, %v497
        %v499 = vpop.f32.mrb[0].mxu0
        %v500 = vpop.f32.mrb[0].mxu0
        %v501 = vadd.f32 0.0, %v500
        %v502 = vpop.f32.mrb[0].mxu0
        %503 = vmatprep.mubr.bf16.mxu0 0
        %504 = vmatmul.mubr.bf16.gmra.mrb[0].mxu0 %v377
        %v505 = vpop.f32.mrb[0].mxu0
        %v506 = vadd.f32 0.0, %v505
        %v507 = vpop.f32.mrb[0].mxu0
        %v508 = vpop.f32.mrb[0].mxu0
        %v509 = vadd.f32 0.0, %v508
        %v510 = vpop.f32.mrb[0].mxu0
        %511 = vmatprep.mubr.bf16.mxu0 0
        %512 = vmatmul.mubr.bf16.gmra.mrb[0].mxu0 %v378
        %v513 = vpop.f32.mrb[0].mxu0
        %v514 = vadd.f32 0.0, %v513
        %v515 = vpop.f32.mrb[0].mxu0
        %v516 = vpop.f32.mrb[0].mxu0
        %v517 = vadd.f32 0.0, %v516
        %v518 = vpop.f32.mrb[0].mxu0
        %519 = vmatprep.mubr.bf16.mxu0 0
        %520 = vmatmul.mubr.bf16.gmra.mrb[0].mxu0 %v379
        %v521 = vpop.f32.mrb[0].mxu0
        %v522 = vadd.f32 0.0, %v521
        %v523 = vpop.f32.mrb[0].mxu0
        %v524 = vpop.f32.mrb[0].mxu0
        %v525 = vadd.f32 0.0, %v524
        %v526 = vpop.f32.mrb[0].mxu0
        %527 = vmatprep.mubr.bf16.mxu0 0
        %528 = vmatmul.mubr.bf16.gmra.mrb[0].mxu0 %v380
        %v529 = vpop.f32.mrb[0].mxu0
        %v530 = vadd.f32 0.0, %v529
        %v531 = vpop.f32.mrb[0].mxu0
        %v532 = vpop.f32.mrb[0].mxu0
        %v533 = vadd.f32 0.0, %v532
        %v534 = vpop.f32.mrb[0].mxu0
        %535 = vmatprep.mubr.bf16.mxu0 0
        %536 = vmatmul.mubr.bf16.gmra.mrb[0].mxu0 %v381
        %v537 = vpop.f32.mrb[0].mxu0
        %v538 = vadd.f32 0.0, %v537
        %v539 = vpop.f32.mrb[0].mxu0
        %v540 = vpop.f32.mrb[0].mxu0
        %v541 = vadd.f32 0.0, %v540
        %v542 = vpop.f32.mrb[0].mxu0
        %543 = vmatprep.mubr.bf16.mxu0 0
        %544 = vmatmul.mubr.bf16.gmra.mrb[0].mxu0 %v382
        %v545 = vpop.f32.mrb[0].mxu0
        %v546 = vadd.f32 0.0, %v545
        %v547 = vpop.f32.mrb[0].mxu0
        %v548 = vpop.f32.mrb[0].mxu0
        %v549 = vadd.f32 0.0, %v548
        %v550 = vpop.f32.mrb[0].mxu0
        %551 = vmatprep.mubr.bf16.mxu0 0
        %552 = vmatmul.mubr.bf16.gmra.mrb[0].mxu0 %v383
        %v553 = vpop.f32.mrb[0].mxu0
        %v554 = vadd.f32 0.0, %v553
        %v555 = vpop.f32.mrb[0].mxu0
        %v556 = vpop.f32.mrb[0].mxu0
        %v557 = vadd.f32 0.0, %v556
        %v558 = vpop.f32.mrb[0].mxu0
        %559 = vmatprep.mubr.bf16.mxu0 0
        %560 = vmatmul.mubr.bf16.gmra.mrb[0].mxu0 %v384
        %v561 = vpop.f32.mrb[0].mxu0
        %v562 = vadd.f32 0.0, %v561
        %v563 = vpop.f32.mrb[0].mxu0
        %v564 = vpop.f32.mrb[0].mxu0
        %v565 = vadd.f32 0.0, %v564
        %v566 = vpop.f32.mrb[0].mxu0
        %567 = vmatprep.mubr.bf16.mxu0 0
        %568 = vmatmul.mubr.bf16.gmra.mrb[0].mxu0 %v385
        %v569 = vpop.f32.mrb[0].mxu0
        %v570 = vadd.f32 0.0, %v569
        %v571 = vpop.f32.mrb[0].mxu0
        %v572 = vpop.f32.mrb[0].mxu0
        %v573 = vadd.f32 0.0, %v572
        %v574 = vpop.f32.mrb[0].mxu0
        %575 = vmatprep.mubr.bf16.mxu0 0
        %576 = vmatmul.mubr.bf16.gmra.mrb[0].mxu0 %v386
        %v577 = vpop.f32.mrb[0].mxu0
        %v578 = vadd.f32 0.0, %v577
        %v579 = vpop.f32.mrb[0].mxu0
        %v580 = vpop.f32.mrb[0].mxu0
        %v581 = vadd.f32 0.0, %v580
        %v582 = vpop.f32.mrb[0].mxu0
        %583 = vmatprep.mubr.bf16.mxu0 0
        %584 = vmatmul.mubr.bf16.gmra.mrb[0].mxu0 %v387
        %v585 = vpop.f32.mrb[0].mxu0
        %v586 = vadd.f32 0.0, %v585
        %v587 = vpop.f32.mrb[0].mxu0
        %v588 = vpop.f32.mrb[0].mxu0
        %v589 = vadd.f32 0.0, %v588
        %v590 = vpop.f32.mrb[0].mxu0
        %591 = vmatprep.mubr.bf16.mxu0 0
        %592 = vmatmul.mubr.bf16.gmra.mrb[0].mxu0 %v388
        %v593 = vpop.f32.mrb[0].mxu0
        %v594 = vadd.f32 0.0, %v593
        %v595 = vpop.f32.mrb[0].mxu0
        %v596 = vpop.f32.mrb[0].mxu0
        %v597 = vadd.f32 0.0, %v596
        %v598 = vpop.f32.mrb[0].mxu0
        %599 = vmatprep.mubr.bf16.mxu0 0
        %600 = vmatmul.mubr.bf16.gmra.mrb[0].mxu0 %v389
        %v601 = vpop.f32.mrb[0].mxu0
        %v602 = vadd.f32 0.0, %v601
        %v603 = vpop.f32.mrb[0].mxu0
        %v604 = vpop.f32.mrb[0].mxu0
        %v605 = vadd.f32 0.0, %v604
        %v606 = vpop.f32.mrb[0].mxu0
        %607 = vmatprep.mubr.bf16.mxu0 0
        %608 = vmatmul.mubr.bf16.gmra.mrb[0].mxu0 %v390
        %v609 = vpop.f32.mrb[0].mxu0
        %v610 = vadd.f32 0.0, %v609
        %v611 = vpop.f32.mrb[0].mxu0
        %v612 = vpop.f32.mrb[0].mxu0
        %v613 = vadd.f32 0.0, %v612
        %v614 = vpop.f32.mrb[0].mxu0
        %615 = vdwg.mxu0
        %v616 = vmax.f32 %v490, 0.0
        %v617 = vmax.f32 %v493, 0.0
        %v618 = vmax.f32 %v498, 0.0
        %v619 = vmax.f32 %v501, 0.0
        %v620 = vmax.f32 %v506, 0.0
        %v621 = vmax.f32 %v509, 0.0
        %v622 = vmax.f32 %v514, 0.0
        %v623 = vmax.f32 %v517, 0.0
        %v624 = vmax.f32 %v522, 0.0
        %v625 = vmax.f32 %v525, 0.0
        %v626 = vmax.f32 %v530, 0.0
        %v627 = vmax.f32 %v533, 0.0
        %v628 = vmax.f32 %v538, 0.0
        %v629 = vmax.f32 %v541, 0.0
        %v630 = vmax.f32 %v546, 0.0
        %v631 = vmax.f32 %v549, 0.0
        %v632 = vmax.f32 %v554, 0.0
        %v633 = vmax.f32 %v557, 0.0
        %v634 = vmax.f32 %v562, 0.0
        %v635 = vmax.f32 %v565, 0.0
        %v636 = vmax.f32 %v570, 0.0
        %v637 = vmax.f32 %v573, 0.0
        %v638 = vmax.f32 %v578, 0.0
        %v639 = vmax.f32 %v581, 0.0
        %v640 = vmax.f32 %v586, 0.0
        %v641 = vmax.f32 %v589, 0.0
        %v642 = vmax.f32 %v594, 0.0
        %v643 = vmax.f32 %v597, 0.0
        %v644 = vmax.f32 %v602, 0.0
        %v645 = vmax.f32 %v605, 0.0
        %v646 = vmax.f32 %v610, 0.0
        %v647 = vmax.f32 %v613, 0.0
        %v648 = vpack.c.bf16 %v617, %v616
        %v649 = vpack.c.bf16 %v619, %v618
        %v650 = vpack.c.bf16 %v621, %v620
        %v651 = vpack.c.bf16 %v623, %v622
        %v652 = vpack.c.bf16 %v625, %v624
        %v653 = vpack.c.bf16 %v627, %v626
        %v654 = vpack.c.bf16 %v629, %v628
        %v655 = vpack.c.bf16 %v631, %v630
        %v656 = vpack.c.bf16 %v633, %v632
        %v657 = vpack.c.bf16 %v635, %v634
        %v658 = vpack.c.bf16 %v637, %v636
        %v659 = vpack.c.bf16 %v639, %v638
        %v660 = vpack.c.bf16 %v641, %v640
        %v661 = vpack.c.bf16 %v643, %v642
        %v662 = vpack.c.bf16 %v645, %v644
        %v663 = vpack.c.bf16 %v647, %v646
        %v664 = vld [vmem:[#allocation7] sm:$0xf]
        %v665 = vld [vmem:[#allocation7 + $0x4] sm:$0xf]
        %v666 = vld [vmem:[#allocation7 + $0x8] sm:$0xf]
        %v667 = vld [vmem:[#allocation7 + $0xc] sm:$0xf]
        %v668 = vld [vmem:[#allocation7 + $0x10] sm:$0xf]
        %v669 = vld [vmem:[#allocation7 + $0x14] sm:$0xf]
        %v670 = vld [vmem:[#allocation7 + $0x18] sm:$0xf]
        %v671 = vld [vmem:[#allocation7 + $0x1c] sm:$0xf]
        %v672 = vld [vmem:[#allocation7 + $0x20] sm:$0xf]
        %v673 = vld [vmem:[#allocation7 + $0x24] sm:$0xf]
        %v674 = vld [vmem:[#allocation7 + $0x28] sm:$0xf]
        %v675 = vld [vmem:[#allocation7 + $0x2c] sm:$0xf]
        %v676 = vld [vmem:[#allocation7 + $0x30] sm:$0xf]
        %v677 = vld [vmem:[#allocation7 + $0x34] sm:$0xf]
        %v678 = vld [vmem:[#allocation7 + $0x38] sm:$0xf]
        %v679 = vld [vmem:[#allocation7 + $0x3c] sm:$0xf]
        %v696 = vunpack.c.l.b16 %v664
        %v697 = vunpack.c.l.b16 %v665
        %v698 = vunpack.c.l.b16 %v666
        %v699 = vunpack.c.l.b16 %v667
        %v700 = vunpack.c.l.b16 %v668
        %v701 = vunpack.c.l.b16 %v669
        %v702 = vunpack.c.l.b16 %v670
        %v703 = vunpack.c.l.b16 %v671
        %v704 = vunpack.c.l.b16 %v672
        %v705 = vunpack.c.l.b16 %v673
        %v706 = vunpack.c.l.b16 %v674
        %v707 = vunpack.c.l.b16 %v675
        %v708 = vunpack.c.l.b16 %v676
        %v709 = vunpack.c.l.b16 %v677
        %v710 = vunpack.c.l.b16 %v678
        %v711 = vunpack.c.l.b16 %v679
        %v712 = vpack.c.b16 %v697, %v696
        %v713 = vpack.c.b16 %v699, %v698
        %v714 = vpack.c.b16 %v701, %v700
        %v715 = vpack.c.b16 %v703, %v702
        %v716 = vpack.c.b16 %v705, %v704
        %v717 = vpack.c.b16 %v707, %v706
        %v718 = vpack.c.b16 %v709, %v708
        %v719 = vpack.c.b16 %v711, %v710
        %728 = vmatprep.subr.bf16.mxu0 0
        %729 = vmatpush1.bf16.msra.mxu0 %v712
        %730 = vmatprep.subr.bf16.mxu0 0
        %731 = vmatpush1.bf16.msra.mxu0 %v713
        %732 = vmatprep.subr.bf16.mxu0 0
        %733 = vmatpush1.bf16.msra.mxu0 %v714
        %734 = vmatprep.subr.bf16.mxu0 0
        %735 = vmatpush1.bf16.msra.mxu0 %v715
        %736 = vmatprep.subr.bf16.mxu0 0
        %737 = vmatpush1.bf16.msra.mxu0 %v716
        %738 = vmatprep.subr.bf16.mxu0 0
        %739 = vmatpush1.bf16.msra.mxu0 %v717
        %740 = vmatprep.subr.bf16.mxu0 0
        %741 = vmatpush1.bf16.msra.mxu0 %v718
        %742 = vmatprep.subr.bf16.mxu0 0
        %743 = vmatpush1.bf16.msra.mxu0 %v719
        %744 = vmatprep.subr.bf16.mxu0 0
        %745 = vmatpush1.bf16.msra.mxu0 0
        %746 = vmatprep.subr.bf16.mxu0 0
        %747 = vmatpush1.bf16.msra.mxu0 0
        %748 = vmatprep.subr.bf16.mxu0 0
        %749 = vmatpush1.bf16.msra.mxu0 0
        %750 = vmatprep.subr.bf16.mxu0 0
        %751 = vmatpush1.bf16.msra.mxu0 0
        %752 = vmatprep.subr.bf16.mxu0 0
        %753 = vmatpush1.bf16.msra.mxu0 0
        %754 = vmatprep.subr.bf16.mxu0 0
        %755 = vmatpush1.bf16.msra.mxu0 0
        %756 = vmatprep.subr.bf16.mxu0 0
        %757 = vmatpush1.bf16.msra.mxu0 0
        %758 = vmatprep.subr.bf16.mxu0 0
        %759 = vmatpush1.bf16.msra.mxu0 0
        %760 = vmatprep.mubr.bf16.mxu0 0
        %761 = vmatmul.mubr.bf16.gmra.mrb[0].mxu0 %v648
        %v762 = vpop.f32.mrb[0].mxu0
        %v763 = vadd.f32 0.0, %v762
        %v764 = vpop.f32.mrb[0].mxu0
        %v765 = vpop.f32.mrb[0].mxu0
        %v766 = vadd.f32 0.0, %v765
        %v767 = vpop.f32.mrb[0].mxu0
        %768 = vmatprep.mubr.bf16.mxu0 0
        %769 = vmatmul.mubr.bf16.gmra.mrb[0].mxu0 %v649
        %v770 = vpop.f32.mrb[0].mxu0
        %v771 = vadd.f32 0.0, %v770
        %v772 = vpop.f32.mrb[0].mxu0
        %v773 = vpop.f32.mrb[0].mxu0
        %v774 = vadd.f32 0.0, %v773
        %v775 = vpop.f32.mrb[0].mxu0
        %776 = vmatprep.mubr.bf16.mxu0 0
        %777 = vmatmul.mubr.bf16.gmra.mrb[0].mxu0 %v650
        %v778 = vpop.f32.mrb[0].mxu0
        %v779 = vadd.f32 0.0, %v778
        %v780 = vpop.f32.mrb[0].mxu0
        %v781 = vpop.f32.mrb[0].mxu0
        %v782 = vadd.f32 0.0, %v781
        %v783 = vpop.f32.mrb[0].mxu0
        %784 = vmatprep.mubr.bf16.mxu0 0
        %785 = vmatmul.mubr.bf16.gmra.mrb[0].mxu0 %v651
        %v786 = vpop.f32.mrb[0].mxu0
        %v787 = vadd.f32 0.0, %v786
        %v788 = vpop.f32.mrb[0].mxu0
        %v789 = vpop.f32.mrb[0].mxu0
        %v790 = vadd.f32 0.0, %v789
        %v791 = vpop.f32.mrb[0].mxu0
        %792 = vmatprep.mubr.bf16.mxu0 0
        %793 = vmatmul.mubr.bf16.gmra.mrb[0].mxu0 %v652
        %v794 = vpop.f32.mrb[0].mxu0
        %v795 = vadd.f32 0.0, %v794
        %v796 = vpop.f32.mrb[0].mxu0
        %v797 = vpop.f32.mrb[0].mxu0
        %v798 = vadd.f32 0.0, %v797
        %v799 = vpop.f32.mrb[0].mxu0
        %800 = vmatprep.mubr.bf16.mxu0 0
        %801 = vmatmul.mubr.bf16.gmra.mrb[0].mxu0 %v653
        %v802 = vpop.f32.mrb[0].mxu0
        %v803 = vadd.f32 0.0, %v802
        %v804 = vpop.f32.mrb[0].mxu0
        %v805 = vpop.f32.mrb[0].mxu0
        %v806 = vadd.f32 0.0, %v805
        %v807 = vpop.f32.mrb[0].mxu0
        %808 = vmatprep.mubr.bf16.mxu0 0
        %809 = vmatmul.mubr.bf16.gmra.mrb[0].mxu0 %v654
        %v810 = vpop.f32.mrb[0].mxu0
        %v811 = vadd.f32 0.0, %v810
        %v812 = vpop.f32.mrb[0].mxu0
        %v813 = vpop.f32.mrb[0].mxu0
        %v814 = vadd.f32 0.0, %v813
        %v815 = vpop.f32.mrb[0].mxu0
        %816 = vmatprep.mubr.bf16.mxu0 0
        %817 = vmatmul.mubr.bf16.gmra.mrb[0].mxu0 %v655
        %v818 = vpop.f32.mrb[0].mxu0
        %v819 = vadd.f32 0.0, %v818
        %v820 = vpop.f32.mrb[0].mxu0
        %v821 = vpop.f32.mrb[0].mxu0
        %v822 = vadd.f32 0.0, %v821
        %v823 = vpop.f32.mrb[0].mxu0
        %824 = vmatprep.mubr.bf16.mxu0 0
        %825 = vmatmul.mubr.bf16.gmra.mrb[0].mxu0 %v656
        %v826 = vpop.f32.mrb[0].mxu0
        %v827 = vadd.f32 0.0, %v826
        %v828 = vpop.f32.mrb[0].mxu0
        %v829 = vpop.f32.mrb[0].mxu0
        %v830 = vadd.f32 0.0, %v829
        %v831 = vpop.f32.mrb[0].mxu0
        %832 = vmatprep.mubr.bf16.mxu0 0
        %833 = vmatmul.mubr.bf16.gmra.mrb[0].mxu0 %v657
        %v834 = vpop.f32.mrb[0].mxu0
        %v835 = vadd.f32 0.0, %v834
        %v836 = vpop.f32.mrb[0].mxu0
        %v837 = vpop.f32.mrb[0].mxu0
        %v838 = vadd.f32 0.0, %v837
        %v839 = vpop.f32.mrb[0].mxu0
        %840 = vmatprep.mubr.bf16.mxu0 0
        %841 = vmatmul.mubr.bf16.gmra.mrb[0].mxu0 %v658
        %v842 = vpop.f32.mrb[0].mxu0
        %v843 = vadd.f32 0.0, %v842
        %v844 = vpop.f32.mrb[0].mxu0
        %v845 = vpop.f32.mrb[0].mxu0
        %v846 = vadd.f32 0.0, %v845
        %v847 = vpop.f32.mrb[0].mxu0
        %848 = vmatprep.mubr.bf16.mxu0 0
        %849 = vmatmul.mubr.bf16.gmra.mrb[0].mxu0 %v659
        %v850 = vpop.f32.mrb[0].mxu0
        %v851 = vadd.f32 0.0, %v850
        %v852 = vpop.f32.mrb[0].mxu0
        %v853 = vpop.f32.mrb[0].mxu0
        %v854 = vadd.f32 0.0, %v853
        %v855 = vpop.f32.mrb[0].mxu0
        %856 = vmatprep.mubr.bf16.mxu0 0
        %857 = vmatmul.mubr.bf16.gmra.mrb[0].mxu0 %v660
        %v858 = vpop.f32.mrb[0].mxu0
        %v859 = vadd.f32 0.0, %v858
        %v860 = vpop.f32.mrb[0].mxu0
        %v861 = vpop.f32.mrb[0].mxu0
        %v862 = vadd.f32 0.0, %v861
        %v863 = vpop.f32.mrb[0].mxu0
        %864 = vmatprep.mubr.bf16.mxu0 0
        %865 = vmatmul.mubr.bf16.gmra.mrb[0].mxu0 %v661
        %v866 = vpop.f32.mrb[0].mxu0
        %v867 = vadd.f32 0.0, %v866
        %v868 = vpop.f32.mrb[0].mxu0
        %v869 = vpop.f32.mrb[0].mxu0
        %v870 = vadd.f32 0.0, %v869
        %v871 = vpop.f32.mrb[0].mxu0
        %872 = vmatprep.mubr.bf16.mxu0 0
        %873 = vmatmul.mubr.bf16.gmra.mrb[0].mxu0 %v662
        %v874 = vpop.f32.mrb[0].mxu0
        %v875 = vadd.f32 0.0, %v874
        %v876 = vpop.f32.mrb[0].mxu0
        %v877 = vpop.f32.mrb[0].mxu0
        %v878 = vadd.f32 0.0, %v877
        %v879 = vpop.f32.mrb[0].mxu0
        %880 = vmatprep.mubr.bf16.mxu0 0
        %881 = vmatmul.mubr.bf16.gmra.mrb[0].mxu0 %v663
        %v882 = vpop.f32.mrb[0].mxu0
        %v883 = vadd.f32 0.0, %v882
        %v884 = vpop.f32.mrb[0].mxu0
        %v885 = vpop.f32.mrb[0].mxu0
        %v886 = vadd.f32 0.0, %v885
        %v887 = vpop.f32.mrb[0].mxu0
        %888 = vdwg.mxu0
        %v889 = vxor.u32 %v763, 2147483648
        %v890 = vxor.u32 %v766, 2147483648
        %v891 = vxor.u32 %v771, 2147483648
        %v892 = vxor.u32 %v774, 2147483648
        %v893 = vxor.u32 %v779, 2147483648
        %v894 = vxor.u32 %v782, 2147483648
        %v895 = vxor.u32 %v787, 2147483648
        %v896 = vxor.u32 %v790, 2147483648
        %v897 = vxor.u32 %v795, 2147483648
        %v898 = vxor.u32 %v798, 2147483648
        %v899 = vxor.u32 %v803, 2147483648
        %v900 = vxor.u32 %v806, 2147483648
        %v901 = vxor.u32 %v811, 2147483648
        %v902 = vxor.u32 %v814, 2147483648
        %v903 = vxor.u32 %v819, 2147483648
        %v904 = vxor.u32 %v822, 2147483648
        %v905 = vxor.u32 %v827, 2147483648
        %v906 = vxor.u32 %v830, 2147483648
        %v907 = vxor.u32 %v835, 2147483648
        %v908 = vxor.u32 %v838, 2147483648
        %v909 = vxor.u32 %v843, 2147483648
        %v910 = vxor.u32 %v846, 2147483648
        %v911 = vxor.u32 %v851, 2147483648
        %v912 = vxor.u32 %v854, 2147483648
        %v913 = vxor.u32 %v859, 2147483648
        %v914 = vxor.u32 %v862, 2147483648
        %v915 = vxor.u32 %v867, 2147483648
        %v916 = vxor.u32 %v870, 2147483648
        %v917 = vxor.u32 %v875, 2147483648
        %v918 = vxor.u32 %v878, 2147483648
        %v919 = vxor.u32 %v883, 2147483648
        %v920 = vxor.u32 %v886, 2147483648
        %v921 = vmul.f32 %v889, 1.442695
        %v922 = vpow.pop %v921
        %v923 = vmul.f32 %v890, 1.442695
        %v924 = vpow.pop %v923
        %v925 = vmul.f32 %v891, 1.442695
        %v926 = vpow.pop %v925
        %v927 = vmul.f32 %v892, 1.442695
        %v928 = vpow.pop %v927
        %v929 = vmul.f32 %v893, 1.442695
        %v930 = vpow.pop %v929
        %v931 = vmul.f32 %v894, 1.442695
        %v932 = vpow.pop %v931
        %v933 = vmul.f32 %v895, 1.442695
        %v934 = vpow.pop %v933
        %v935 = vmul.f32 %v896, 1.442695
        %v936 = vpow.pop %v935
        %v937 = vmul.f32 %v897, 1.442695
        %v938 = vpow.pop %v937
        %v939 = vmul.f32 %v898, 1.442695
        %v940 = vpow.pop %v939
        %v941 = vmul.f32 %v899, 1.442695
        %v942 = vpow.pop %v941
        %v943 = vmul.f32 %v900, 1.442695
        %v944 = vpow.pop %v943
        %v945 = vmul.f32 %v901, 1.442695
        %v946 = vpow.pop %v945
        %v947 = vmul.f32 %v902, 1.442695
        %v948 = vpow.pop %v947
        %v949 = vmul.f32 %v903, 1.442695
        %v950 = vpow.pop %v949
        %v951 = vmul.f32 %v904, 1.442695
        %v952 = vpow.pop %v951
        %v953 = vmul.f32 %v905, 1.442695
        %v954 = vpow.pop %v953
        %v955 = vmul.f32 %v906, 1.442695
        %v956 = vpow.pop %v955
        %v957 = vmul.f32 %v907, 1.442695
        %v958 = vpow.pop %v957
        %v959 = vmul.f32 %v908, 1.442695
        %v960 = vpow.pop %v959
        %v961 = vmul.f32 %v909, 1.442695
        %v962 = vpow.pop %v961
        %v963 = vmul.f32 %v910, 1.442695
        %v964 = vpow.pop %v963
        %v965 = vmul.f32 %v911, 1.442695
        %v966 = vpow.pop %v965
        %v967 = vmul.f32 %v912, 1.442695
        %v968 = vpow.pop %v967
        %v969 = vmul.f32 %v913, 1.442695
        %v970 = vpow.pop %v969
        %v971 = vmul.f32 %v914, 1.442695
        %v972 = vpow.pop %v971
        %v973 = vmul.f32 %v915, 1.442695
        %v974 = vpow.pop %v973
        %v975 = vmul.f32 %v916, 1.442695
        %v976 = vpow.pop %v975
        %v977 = vmul.f32 %v917, 1.442695
        %v978 = vpow.pop %v977
        %v979 = vmul.f32 %v918, 1.442695
        %v980 = vpow.pop %v979
        %v981 = vmul.f32 %v919, 1.442695
        %v982 = vpow.pop %v981
        %v983 = vmul.f32 %v920, 1.442695
        %v984 = vpow.pop %v983
        %v985 = vadd.f32 %v922, 1.0
        %v986 = vadd.f32 %v924, 1.0
        %v987 = vadd.f32 %v926, 1.0
        %v988 = vadd.f32 %v928, 1.0
        %v989 = vadd.f32 %v930, 1.0
        %v990 = vadd.f32 %v932, 1.0
        %v991 = vadd.f32 %v934, 1.0
        %v992 = vadd.f32 %v936, 1.0
        %v993 = vadd.f32 %v938, 1.0
        %v994 = vadd.f32 %v940, 1.0
        %v995 = vadd.f32 %v942, 1.0
        %v996 = vadd.f32 %v944, 1.0
        %v997 = vadd.f32 %v946, 1.0
        %v998 = vadd.f32 %v948, 1.0
        %v999 = vadd.f32 %v950, 1.0
        %v1000 = vadd.f32 %v952, 1.0
        %v1001 = vadd.f32 %v954, 1.0
        %v1002 = vadd.f32 %v956, 1.0
        %v1003 = vadd.f32 %v958, 1.0
        %v1004 = vadd.f32 %v960, 1.0
        %v1005 = vadd.f32 %v962, 1.0
        %v1006 = vadd.f32 %v964, 1.0
        %v1007 = vadd.f32 %v966, 1.0
        %v1008 = vadd.f32 %v968, 1.0
        %v1009 = vadd.f32 %v970, 1.0
        %v1010 = vadd.f32 %v972, 1.0
        %v1011 = vadd.f32 %v974, 1.0
        %v1012 = vadd.f32 %v976, 1.0
        %v1013 = vadd.f32 %v978, 1.0
        %v1014 = vadd.f32 %v980, 1.0
        %v1015 = vadd.f32 %v982, 1.0
        %v1016 = vadd.f32 %v984, 1.0
        %v1017 = vrcp.pop %v985
        %v1018 = vmul.f32 1.0, %v1017
        %v1019 = vrcp.pop %v986
        %v1020 = vmul.f32 1.0, %v1019
        %v1021 = vrcp.pop %v987
        %v1022 = vmul.f32 1.0, %v1021
        %v1023 = vrcp.pop %v988
        %v1024 = vmul.f32 1.0, %v1023
        %v1025 = vrcp.pop %v989
        %v1026 = vmul.f32 1.0, %v1025
        %v1027 = vrcp.pop %v990
        %v1028 = vmul.f32 1.0, %v1027
        %v1029 = vrcp.pop %v991
        %v1030 = vmul.f32 1.0, %v1029
        %v1031 = vrcp.pop %v992
        %v1032 = vmul.f32 1.0, %v1031
        %v1033 = vrcp.pop %v993
        %v1034 = vmul.f32 1.0, %v1033
        %v1035 = vrcp.pop %v994
        %v1036 = vmul.f32 1.0, %v1035
        %v1037 = vrcp.pop %v995
        %v1038 = vmul.f32 1.0, %v1037
        %v1039 = vrcp.pop %v996
        %v1040 = vmul.f32 1.0, %v1039
        %v1041 = vrcp.pop %v997
        %v1042 = vmul.f32 1.0, %v1041
        %v1043 = vrcp.pop %v998
        %v1044 = vmul.f32 1.0, %v1043
        %v1045 = vrcp.pop %v999
        %v1046 = vmul.f32 1.0, %v1045
        %v1047 = vrcp.pop %v1000
        %v1048 = vmul.f32 1.0, %v1047
        %v1049 = vrcp.pop %v1001
        %v1050 = vmul.f32 1.0, %v1049
        %v1051 = vrcp.pop %v1002
        %v1052 = vmul.f32 1.0, %v1051
        %v1053 = vrcp.pop %v1003
        %v1054 = vmul.f32 1.0, %v1053
        %v1055 = vrcp.pop %v1004
        %v1056 = vmul.f32 1.0, %v1055
        %v1057 = vrcp.pop %v1005
        %v1058 = vmul.f32 1.0, %v1057
        %v1059 = vrcp.pop %v1006
        %v1060 = vmul.f32 1.0, %v1059
        %v1061 = vrcp.pop %v1007
        %v1062 = vmul.f32 1.0, %v1061
        %v1063 = vrcp.pop %v1008
        %v1064 = vmul.f32 1.0, %v1063
        %v1065 = vrcp.pop %v1009
        %v1066 = vmul.f32 1.0, %v1065
        %v1067 = vrcp.pop %v1010
        %v1068 = vmul.f32 1.0, %v1067
        %v1069 = vrcp.pop %v1011
        %v1070 = vmul.f32 1.0, %v1069
        %v1071 = vrcp.pop %v1012
        %v1072 = vmul.f32 1.0, %v1071
        %v1073 = vrcp.pop %v1013
        %v1074 = vmul.f32 1.0, %v1073
        %v1075 = vrcp.pop %v1014
        %v1076 = vmul.f32 1.0, %v1075
        %v1077 = vrcp.pop %v1015
        %v1078 = vmul.f32 1.0, %v1077
        %v1079 = vrcp.pop %v1016
        %v1080 = vmul.f32 1.0, %v1079
        %v1081 = vpack.c.bf16 %v1020, %v1018
        %v1082 = vpack.c.bf16 %v1024, %v1022
        %v1083 = vpack.c.bf16 %v1028, %v1026
        %v1084 = vpack.c.bf16 %v1032, %v1030
        %v1085 = vpack.c.bf16 %v1036, %v1034
        %v1086 = vpack.c.bf16 %v1040, %v1038
        %v1087 = vpack.c.bf16 %v1044, %v1042
        %v1088 = vpack.c.bf16 %v1048, %v1046
        %v1089 = vpack.c.bf16 %v1052, %v1050
        %v1090 = vpack.c.bf16 %v1056, %v1054
        %v1091 = vpack.c.bf16 %v1060, %v1058
        %v1092 = vpack.c.bf16 %v1064, %v1062
        %v1093 = vpack.c.bf16 %v1068, %v1066
        %v1094 = vpack.c.bf16 %v1072, %v1070
        %v1095 = vpack.c.bf16 %v1076, %v1074
        %v1096 = vpack.c.bf16 %v1080, %v1078
        %v1097 = vld [vmem:[#allocation8] sm:$0xf]
        %v1098 = vld [vmem:[#allocation8 + $0x4] sm:$0xf]
        %v1099 = vld [vmem:[#allocation8 + $0x8] sm:$0xf]
        %v1100 = vld [vmem:[#allocation8 + $0xc] sm:$0xf]
        %v1101 = vld [vmem:[#allocation8 + $0x10] sm:$0xf]
        %v1102 = vld [vmem:[#allocation8 + $0x14] sm:$0xf]
        %v1103 = vld [vmem:[#allocation8 + $0x18] sm:$0xf]
        %v1104 = vld [vmem:[#allocation8 + $0x1c] sm:$0xf]
        %v1105 = vld [vmem:[#allocation8 + $0x20] sm:$0xf]
        %v1106 = vld [vmem:[#allocation8 + $0x24] sm:$0xf]
        %v1107 = vld [vmem:[#allocation8 + $0x28] sm:$0xf]
        %v1108 = vld [vmem:[#allocation8 + $0x2c] sm:$0xf]
        %v1109 = vld [vmem:[#allocation8 + $0x30] sm:$0xf]
        %v1110 = vld [vmem:[#allocation8 + $0x34] sm:$0xf]
        %v1111 = vld [vmem:[#allocation8 + $0x38] sm:$0xf]
        %v1112 = vld [vmem:[#allocation8 + $0x3c] sm:$0xf]
        %v1129 = vunpack.c.l.b16 %v1097
        %v1130 = vunpack.c.l.b16 %v1098
        %v1131 = vunpack.c.l.b16 %v1099
        %v1132 = vunpack.c.l.b16 %v1100
        %v1133 = vunpack.c.l.b16 %v1101
        %v1134 = vunpack.c.l.b16 %v1102
        %v1135 = vunpack.c.l.b16 %v1103
        %v1136 = vunpack.c.l.b16 %v1104
        %v1137 = vunpack.c.l.b16 %v1105
        %v1138 = vunpack.c.l.b16 %v1106
        %v1139 = vunpack.c.l.b16 %v1107
        %v1140 = vunpack.c.l.b16 %v1108
        %v1141 = vunpack.c.l.b16 %v1109
        %v1142 = vunpack.c.l.b16 %v1110
        %v1143 = vunpack.c.l.b16 %v1111
        %v1144 = vunpack.c.l.b16 %v1112
        %v1145 = vpack.c.b16 %v1130, %v1129
        %v1146 = vpack.c.b16 %v1132, %v1131
        %v1147 = vpack.c.b16 %v1134, %v1133
        %v1148 = vpack.c.b16 %v1136, %v1135
        %v1149 = vpack.c.b16 %v1138, %v1137
        %v1150 = vpack.c.b16 %v1140, %v1139
        %v1151 = vpack.c.b16 %v1142, %v1141
        %v1152 = vpack.c.b16 %v1144, %v1143
        %1161 = vmatprep.subr.bf16.mxu0 0
        %1162 = vmatpush1.bf16.msra.mxu0 %v1145
        %1163 = vmatprep.subr.bf16.mxu0 0
        %1164 = vmatpush1.bf16.msra.mxu0 %v1146
        %1165 = vmatprep.subr.bf16.mxu0 0
        %1166 = vmatpush1.bf16.msra.mxu0 %v1147
        %1167 = vmatprep.subr.bf16.mxu0 0
        %1168 = vmatpush1.bf16.msra.mxu0 %v1148
        %1169 = vmatprep.subr.bf16.mxu0 0
        %1170 = vmatpush1.bf16.msra.mxu0 %v1149
        %1171 = vmatprep.subr.bf16.mxu0 0
        %1172 = vmatpush1.bf16.msra.mxu0 %v1150
        %1173 = vmatprep.subr.bf16.mxu0 0
        %1174 = vmatpush1.bf16.msra.mxu0 %v1151
        %1175 = vmatprep.subr.bf16.mxu0 0
        %1176 = vmatpush1.bf16.msra.mxu0 %v1152
        %1177 = vmatprep.subr.bf16.mxu0 0
        %1178 = vmatpush1.bf16.msra.mxu0 0
        %1179 = vmatprep.subr.bf16.mxu0 0
        %1180 = vmatpush1.bf16.msra.mxu0 0
        %1181 = vmatprep.subr.bf16.mxu0 0
        %1182 = vmatpush1.bf16.msra.mxu0 0
        %1183 = vmatprep.subr.bf16.mxu0 0
        %1184 = vmatpush1.bf16.msra.mxu0 0
        %1185 = vmatprep.subr.bf16.mxu0 0
        %1186 = vmatpush1.bf16.msra.mxu0 0
        %1187 = vmatprep.subr.bf16.mxu0 0
        %1188 = vmatpush1.bf16.msra.mxu0 0
        %1189 = vmatprep.subr.bf16.mxu0 0
        %1190 = vmatpush1.bf16.msra.mxu0 0
        %1191 = vmatprep.subr.bf16.mxu0 0
        %1192 = vmatpush1.bf16.msra.mxu0 0
        %1193 = vmatprep.mubr.bf16.mxu0 0
        %1194 = vmatmul.mubr.bf16.gmra.mrb[0].mxu0 %v1081
        %v1195 = vpop.f32.mrb[0].mxu0
        %v1196 = vadd.f32 0.0, %v1195
        %v1197 = vpop.f32.mrb[0].mxu0
        %v1198 = vpop.f32.mrb[0].mxu0
        %v1199 = vadd.f32 0.0, %v1198
        %v1200 = vpop.f32.mrb[0].mxu0
        %1201 = vmatprep.mubr.bf16.mxu0 0
        %1202 = vmatmul.mubr.bf16.gmra.mrb[0].mxu0 %v1082
        %v1203 = vpop.f32.mrb[0].mxu0
        %v1204 = vadd.f32 0.0, %v1203
        %v1205 = vpop.f32.mrb[0].mxu0
        %v1206 = vpop.f32.mrb[0].mxu0
        %v1207 = vadd.f32 0.0, %v1206
        %v1208 = vpop.f32.mrb[0].mxu0
        %1209 = vmatprep.mubr.bf16.mxu0 0
        %1210 = vmatmul.mubr.bf16.gmra.mrb[0].mxu0 %v1083
        %v1211 = vpop.f32.mrb[0].mxu0
        %v1212 = vadd.f32 0.0, %v1211
        %v1213 = vpop.f32.mrb[0].mxu0
        %v1214 = vpop.f32.mrb[0].mxu0
        %v1215 = vadd.f32 0.0, %v1214
        %v1216 = vpop.f32.mrb[0].mxu0
        %1217 = vmatprep.mubr.bf16.mxu0 0
        %1218 = vmatmul.mubr.bf16.gmra.mrb[0].mxu0 %v1084
        %v1219 = vpop.f32.mrb[0].mxu0
        %v1220 = vadd.f32 0.0, %v1219
        %v1221 = vpop.f32.mrb[0].mxu0
        %v1222 = vpop.f32.mrb[0].mxu0
        %v1223 = vadd.f32 0.0, %v1222
        %v1224 = vpop.f32.mrb[0].mxu0
        %1225 = vmatprep.mubr.bf16.mxu0 0
        %1226 = vmatmul.mubr.bf16.gmra.mrb[0].mxu0 %v1085
        %v1227 = vpop.f32.mrb[0].mxu0
        %v1228 = vadd.f32 0.0, %v1227
        %v1229 = vpop.f32.mrb[0].mxu0
        %v1230 = vpop.f32.mrb[0].mxu0
        %v1231 = vadd.f32 0.0, %v1230
        %v1232 = vpop.f32.mrb[0].mxu0
        %1233 = vmatprep.mubr.bf16.mxu0 0
        %1234 = vmatmul.mubr.bf16.gmra.mrb[0].mxu0 %v1086
        %v1235 = vpop.f32.mrb[0].mxu0
        %v1236 = vadd.f32 0.0, %v1235
        %v1237 = vpop.f32.mrb[0].mxu0
        %v1238 = vpop.f32.mrb[0].mxu0
        %v1239 = vadd.f32 0.0, %v1238
        %v1240 = vpop.f32.mrb[0].mxu0
        %1241 = vmatprep.mubr.bf16.mxu0 0
        %1242 = vmatmul.mubr.bf16.gmra.mrb[0].mxu0 %v1087
        %v1243 = vpop.f32.mrb[0].mxu0
        %v1244 = vadd.f32 0.0, %v1243
        %v1245 = vpop.f32.mrb[0].mxu0
        %v1246 = vpop.f32.mrb[0].mxu0
        %v1247 = vadd.f32 0.0, %v1246
        %v1248 = vpop.f32.mrb[0].mxu0
        %1249 = vmatprep.mubr.bf16.mxu0 0
        %1250 = vmatmul.mubr.bf16.gmra.mrb[0].mxu0 %v1088
        %v1251 = vpop.f32.mrb[0].mxu0
        %v1252 = vadd.f32 0.0, %v1251
        %v1253 = vpop.f32.mrb[0].mxu0
        %v1254 = vpop.f32.mrb[0].mxu0
        %v1255 = vadd.f32 0.0, %v1254
        %v1256 = vpop.f32.mrb[0].mxu0
        %1257 = vmatprep.mubr.bf16.mxu0 0
        %1258 = vmatmul.mubr.bf16.gmra.mrb[0].mxu0 %v1089
        %v1259 = vpop.f32.mrb[0].mxu0
        %v1260 = vadd.f32 0.0, %v1259
        %v1261 = vpop.f32.mrb[0].mxu0
        %v1262 = vpop.f32.mrb[0].mxu0
        %v1263 = vadd.f32 0.0, %v1262
        %v1264 = vpop.f32.mrb[0].mxu0
        %1265 = vmatprep.mubr.bf16.mxu0 0
        %1266 = vmatmul.mubr.bf16.gmra.mrb[0].mxu0 %v1090
        %v1267 = vpop.f32.mrb[0].mxu0
        %v1268 = vadd.f32 0.0, %v1267
        %v1269 = vpop.f32.mrb[0].mxu0
        %v1270 = vpop.f32.mrb[0].mxu0
        %v1271 = vadd.f32 0.0, %v1270
        %v1272 = vpop.f32.mrb[0].mxu0
        %1273 = vmatprep.mubr.bf16.mxu0 0
        %1274 = vmatmul.mubr.bf16.gmra.mrb[0].mxu0 %v1091
        %v1275 = vpop.f32.mrb[0].mxu0
        %v1276 = vadd.f32 0.0, %v1275
        %v1277 = vpop.f32.mrb[0].mxu0
        %v1278 = vpop.f32.mrb[0].mxu0
        %v1279 = vadd.f32 0.0, %v1278
        %v1280 = vpop.f32.mrb[0].mxu0
        %1281 = vmatprep.mubr.bf16.mxu0 0
        %1282 = vmatmul.mubr.bf16.gmra.mrb[0].mxu0 %v1092
        %v1283 = vpop.f32.mrb[0].mxu0
        %v1284 = vadd.f32 0.0, %v1283
        %v1285 = vpop.f32.mrb[0].mxu0
        %v1286 = vpop.f32.mrb[0].mxu0
        %v1287 = vadd.f32 0.0, %v1286
        %v1288 = vpop.f32.mrb[0].mxu0
        %1289 = vmatprep.mubr.bf16.mxu0 0
        %1290 = vmatmul.mubr.bf16.gmra.mrb[0].mxu0 %v1093
        %v1291 = vpop.f32.mrb[0].mxu0
        %v1292 = vadd.f32 0.0, %v1291
        %v1293 = vpop.f32.mrb[0].mxu0
        %v1294 = vpop.f32.mrb[0].mxu0
        %v1295 = vadd.f32 0.0, %v1294
        %v1296 = vpop.f32.mrb[0].mxu0
        %1297 = vmatprep.mubr.bf16.mxu0 0
        %1298 = vmatmul.mubr.bf16.gmra.mrb[0].mxu0 %v1094
        %v1299 = vpop.f32.mrb[0].mxu0
        %v1300 = vadd.f32 0.0, %v1299
        %v1301 = vpop.f32.mrb[0].mxu0
        %v1302 = vpop.f32.mrb[0].mxu0
        %v1303 = vadd.f32 0.0, %v1302
        %v1304 = vpop.f32.mrb[0].mxu0
        %1305 = vmatprep.mubr.bf16.mxu0 0
        %1306 = vmatmul.mubr.bf16.gmra.mrb[0].mxu0 %v1095
        %v1307 = vpop.f32.mrb[0].mxu0
        %v1308 = vadd.f32 0.0, %v1307
        %v1309 = vpop.f32.mrb[0].mxu0
        %v1310 = vpop.f32.mrb[0].mxu0
        %v1311 = vadd.f32 0.0, %v1310
        %v1312 = vpop.f32.mrb[0].mxu0
        %1313 = vmatprep.mubr.bf16.mxu0 0
        %1314 = vmatmul.mubr.bf16.gmra.mrb[0].mxu0 %v1096
        %v1315 = vpop.f32.mrb[0].mxu0
        %v1316 = vadd.f32 0.0, %v1315
        %v1317 = vpop.f32.mrb[0].mxu0
        %v1318 = vpop.f32.mrb[0].mxu0
        %v1319 = vadd.f32 0.0, %v1318
        %v1320 = vpop.f32.mrb[0].mxu0
        %1321 = vdwg.mxu0
        %v1322 = vtanh.pop %v1196
        %v1323 = vtanh.pop %v1199
        %v1324 = vtanh.pop %v1204
        %v1325 = vtanh.pop %v1207
        %v1326 = vtanh.pop %v1212
        %v1327 = vtanh.pop %v1215
        %v1328 = vtanh.pop %v1220
        %v1329 = vtanh.pop %v1223
        %v1330 = vtanh.pop %v1228
        %v1331 = vtanh.pop %v1231
        %v1332 = vtanh.pop %v1236
        %v1333 = vtanh.pop %v1239
        %v1334 = vtanh.pop %v1244
        %v1335 = vtanh.pop %v1247
        %v1336 = vtanh.pop %v1252
        %v1337 = vtanh.pop %v1255
        %v1338 = vtanh.pop %v1260
        %v1339 = vtanh.pop %v1263
        %v1340 = vtanh.pop %v1268
        %v1341 = vtanh.pop %v1271
        %v1342 = vtanh.pop %v1276
        %v1343 = vtanh.pop %v1279
        %v1344 = vtanh.pop %v1284
        %v1345 = vtanh.pop %v1287
        %v1346 = vtanh.pop %v1292
        %v1347 = vtanh.pop %v1295
        %v1348 = vtanh.pop %v1300
        %v1349 = vtanh.pop %v1303
        %v1350 = vtanh.pop %v1308
        %v1351 = vtanh.pop %v1311
        %v1352 = vtanh.pop %v1316
        %v1353 = vtanh.pop %v1319
        %1354 = vst [vmem:[%s259] sm:$0xff] %v1322
        %1355 = vst [vmem:[%s259 + $0x8] sm:$0xff] %v1323
        %1356 = vst [vmem:[%s259 + $0x10] sm:$0xff] %v1324
        %1357 = vst [vmem:[%s259 + $0x18] sm:$0xff] %v1325
        %1358 = vst [vmem:[%s259 + $0x20] sm:$0xff] %v1326
        %1359 = vst [vmem:[%s259 + $0x28] sm:$0xff] %v1327
        %1360 = vst [vmem:[%s259 + $0x30] sm:$0xff] %v1328
        %1361 = vst [vmem:[%s259 + $0x38] sm:$0xff] %v1329
        %1362 = vst [vmem:[%s259 + $0x40] sm:$0xff] %v1330
        %1363 = vst [vmem:[%s259 + $0x48] sm:$0xff] %v1331
        %1364 = vst [vmem:[%s259 + $0x50] sm:$0xff] %v1332
        %1365 = vst [vmem:[%s259 + $0x58] sm:$0xff] %v1333
        %1366 = vst [vmem:[%s259 + $0x60] sm:$0xff] %v1334
        %1367 = vst [vmem:[%s259 + $0x68] sm:$0xff] %v1335
        %1368 = vst [vmem:[%s259 + $0x70] sm:$0xff] %v1336
        %1369 = vst [vmem:[%s259 + $0x78] sm:$0xff] %v1337
        %1370 = vst [vmem:[%s259 + $0x80] sm:$0xff] %v1338
        %1371 = vst [vmem:[%s259 + $0x88] sm:$0xff] %v1339
        %1372 = vst [vmem:[%s259 + $0x90] sm:$0xff] %v1340
        %1373 = vst [vmem:[%s259 + $0x98] sm:$0xff] %v1341
        %1374 = vst [vmem:[%s259 + $0xa0] sm:$0xff] %v1342
        %1375 = vst [vmem:[%s259 + $0xa8] sm:$0xff] %v1343
        %1376 = vst [vmem:[%s259 + $0xb0] sm:$0xff] %v1344
        %1377 = vst [vmem:[%s259 + $0xb8] sm:$0xff] %v1345
        %1378 = vst [vmem:[%s259 + $0xc0] sm:$0xff] %v1346
        %1379 = vst [vmem:[%s259 + $0xc8] sm:$0xff] %v1347
        %1380 = vst [vmem:[%s259 + $0xd0] sm:$0xff] %v1348
        %1381 = vst [vmem:[%s259 + $0xd8] sm:$0xff] %v1349
        %1382 = vst [vmem:[%s259 + $0xe0] sm:$0xff] %v1350
        %1383 = vst [vmem:[%s259 + $0xe8] sm:$0xff] %v1351
        %1384 = vst [vmem:[%s259 + $0xf0] sm:$0xff] %v1352
        %1385 = vst [vmem:[%s259 + $0xf8] sm:$0xff] %v1353
        %s1386 = sand.u32 %s120, 1
        %s1387 = scalar_lea.sflag [#allocation4], %s1386
        %s1388 = sand.u32 %s120, 1
        %s1389 = smul.addr %s1388, 256
        %s1390 = scalar_lea.vmem [#allocation10], %s1389
        // Predicated region
        $region53: #{tpu_custom_call.1} parent=35 // pred_check
          %p1391 = pneg %p130
        $region54: #{tpu_custom_call.1} parent=35 // pred_check_branch
          %1393 = sbr.rel (%p1391) target = $region56
        $region55: #{tpu_custom_call.1} parent=35 // pred_region
          %s1394 = smul.u32 32, %s23
          %s1396 = ssub.s32 4096, 4096
          %1397 = vsyncadd %s1387, %s1396
          %s1398 = smul.addr %s1394, 128
          %s1399 = scalar_lea.hbm %s4, %s1398
          %s1400 = sshll.u32 %s1390, 4
          %s1401 = int_to_ptr.vmem [resolvable:$true] %s1400
          %1406 = dma.vmem_to_hbm [thread:$0]  %s1401, 4096, %s1399, %s1387, 128, 128, 8
        $region56: #{tpu_custom_call.1} parent=35 // pred_fallthru
          _
      $region36: #{tpu_custom_call.1} parent=5 // pred_fallthru
        _
      %p1407 = scmp.le.s32.totalorder 2, %s18
      // Predicated region
      $region57: #{tpu_custom_call.1} parent=5 // pred_check
        %p1408 = pneg %p1407
      $region58: #{tpu_custom_call.1} parent=5 // pred_check_branch
        %1410 = sbr.rel (%p1408) target = $region60
      $region59: #{tpu_custom_call.1} parent=5 // pred_region
        %s1411 = ssub.s32 %s18, 2
        // Predicated region
        $region61: #{tpu_custom_call.1} parent=59 // pred_check
          %p1412 = pneg %p136
        $region62: #{tpu_custom_call.1} parent=59 // pred_check_branch
          %1414 = sbr.rel (%p1412) target = $region64
        $region63: #{tpu_custom_call.1} parent=59 // pred_region
          %s1415 = sand.u32 %s121, 1
          %s1416 = scalar_lea.sflag [#allocation4], %s1415
          %s1417 = sand.u32 %s121, 1
          %s1418 = smul.addr %s1417, 256
          %s1419 = scalar_lea.vmem [#allocation10], %s1418
          %1420 = dma.done %s1416, 4096
        $region64: #{tpu_custom_call.1} parent=59 // pred_fallthru
          _
      $region60: #{tpu_custom_call.1} parent=5 // pred_fallthru
        _
    $region6: #{tpu_custom_call.1} parent=1 // loop_footer
      %s22 = sadd.s32 1, %s18
    $region7: #{tpu_custom_call.1} parent=1 // loop_footer_branch
      %17 = sbr.rel target = $region3
    $region8: #{tpu_custom_call.1} parent=1 // loop_exit
      _
    %1421 = vsyncpa [#allocation3], 1
    %s1422 = scalar_lea.sflag [#allocation3], 1
    %1423 = vsyncpa %s1422, 1
    %1424 = vsyncpa [#allocation6], 1
    %1425 = vsyncpa [#allocation9], 1
    %1426 = vsyncpa [#allocation4], 1
    %s1427 = scalar_lea.sflag [#allocation4], 1
    %1428 = vsyncpa %s1427, 1

</llo_original>
